<compile_context>
chip_gen: v7x
topology: tpu7x:2x2x1
jax: 0.10.0
libtpu: 0.0.40
codegen_flags: <defaults>
</compile_context>

<pallas_src>
import numpy as np

import jax
import jax.numpy as jnp
from jax.experimental import pallas as pl
from jax.experimental.pallas import tpu as pltpu

HIDDEN = 64     # MLP hidden width
OUT_EXT = 32    # extended final-layer width: 4 groups x 8 lanes
OUT_W = 8       # merged output width (quat 0:4, scale 4:7, lane 7 = 0)


# --------------------------------- kernel ---------------------------------

def _fused_kernel(x_ref, w1_ref, w2_ref, b2_ref, w3e_ref, b3e_ref,
                  amat_ref, smat_ref, out_ref):
    dot = lambda a, b: jnp.dot(a, b, preferred_element_type=jnp.float32)

    x = x_ref[...]                                   # (TM, d_pad) packed input

    # Layer 1 (b1 folded into W1 via the constant-1 column of the packed input)
    h = dot(x, w1_ref[...])
    h = h * jax.nn.sigmoid(h)                        # SiLU

    # Layer 2
    h = dot(h, w2_ref[...]) + b2_ref[...]
    h = h * jax.nn.sigmoid(h)                        # SiLU

    # Layer 3 extended to 32 lanes: group g lanes 0:4 hold MLP quat output g
    # broadcast across 4 lanes (done by the MXU, not the VPU/XLU);
    # group 0 lanes 4:7 hold the scale MLP output; group 1 lanes 4:7 hold 1.0.
    e = dot(h, w3e_ref[...]) + b3e_ref[...]          # (TM, 32)

    # Aux slab from the SAME packed input: group g lanes 0:4 = signed/permuted
    # closest_rotation for the g-th Hamilton-product term; group 0 lanes 4:7 =
    # 1e-3 (via the constant-1 column); group 1 lanes 4:7 = original scales.
    a = dot(x, amat_ref[...])                        # (TM, 32)

    # Quaternion product + scale update = one elementwise multiply, then sum
    # the 4 groups with a tiny matmul -> lane-dense (TM, 8) store.
    out_ref[...] = dot(e * a, smat_ref[...]).astype(out_ref.dtype)


# --------------------------------- wrapper ---------------------------------

def _choose_tm(n, max_tm=2048):
    """Tile rows: >=4 grid steps (>=2 per v7x TC) when n allows, multiple of 8."""
    steps = max(2 * (-(-n // max_tm)), 4)
    tm = -(-n // steps)
    tm = max(8, ((tm + 7) // 8) * 8)
    return min(tm, max_tm)


def _build_constants(params, d_in, d_pad, const_col):
    f32 = jnp.float32
    w1, b1, w2, b2, w3, b3 = [jnp.asarray(p, f32) for p in params]

    # Padded W1 (d_pad, 64) with b1 folded into the constant-1 row.
    w1p = jnp.zeros((d_pad, HIDDEN), f32)
    w1p = w1p.at[:d_in, :].set(w1)
    w1p = w1p.at[const_col, :].set(b1)
    b2r = b2.reshape(1, HIDDEN)

    # Extended final-layer weights (64, 32).
    z1 = jnp.zeros((HIDDEN, 1), f32)
    z4 = jnp.zeros((HIDDEN, 4), f32)
    w3e = jnp.concatenate([
        jnp.tile(w3[:, 0:1], (1, 4)), w3[:, 4:7], z1,   # group 0: q_w | scale out
        jnp.tile(w3[:, 1:2], (1, 4)), z4,               # group 1: q_x | (bias 1.0)
        jnp.tile(w3[:, 2:3], (1, 4)), z4,               # group 2: q_y
        jnp.tile(w3[:, 3:4], (1, 4)), z4,               # group 3: q_z
    ], axis=1)
    b3e = jnp.concatenate([
        jnp.full((4,), b3[0], f32), b3[4:7], jnp.zeros((1,), f32),
        jnp.full((4,), b3[1], f32), jnp.ones((3,), f32), jnp.zeros((1,), f32),
        jnp.full((4,), b3[2], f32), jnp.zeros((4,), f32),
        jnp.full((4,), b3[3], f32), jnp.zeros((4,), f32),
    ]).reshape(1, OUT_EXT)

    # Folded aux matrix (d_pad, 32): crot + csc + aconst in one matrix.
    # Packed column offsets: means 0:3, quats 3:7, trans 7:10, rot_flat 10:22,
    # bary 22:25, scales 25:28, latent 28:d_in, const-1 at const_col.
    amat = np.zeros((d_pad, OUT_EXT), np.float32)
    R, S = 10, 25   # closest_rotation = rot_flat[:, 0:4] = cols R:R+4 = (w2,x2,y2,z2)
    # group 0 lanes 0:4 : ( w2,  x2,  y2,  z2)
    amat[R + 0, 0] = 1.0;  amat[R + 1, 1] = 1.0
    amat[R + 2, 2] = 1.0;  amat[R + 3, 3] = 1.0
    # group 1 lanes 0:4 : (-x2,  w2, -z2,  y2)
    amat[R + 1, 8] = -1.0; amat[R + 0, 9] = 1.0
    amat[R + 3, 10] = -1.0; amat[R + 2, 11] = 1.0
    # group 2 lanes 0:4 : (-y2,  z2,  w2, -x2)
    amat[R + 2, 16] = -1.0; amat[R + 3, 17] = 1.0
    amat[R + 0, 18] = 1.0;  amat[R + 1, 19] = -1.0
    # group 3 lanes 0:4 : (-z2, -y2,  x2,  w2)
    amat[R + 3, 24] = -1.0; amat[R + 2, 25] = -1.0
    amat[R + 1, 26] = 1.0;  amat[R + 0, 27] = 1.0
    # group 1 lanes 4:7 : original scales (the "+ scales" term)
    amat[S + 0, 12] = 1.0; amat[S + 1, 13] = 1.0; amat[S + 2, 14] = 1.0
    # group 0 lanes 4:7 : 1e-3 constant (the "* 0.001" factor)
    amat[const_col, 4:7] = 1e-3

    # Group-sum matrix: out[:, j] = sum_g P[:, 8g + j]
    smat = np.tile(np.eye(OUT_W, dtype=np.float32), (4, 1))   # (32, 8)

    return w1p, w2, b2r, w3e, b3e, jnp.asarray(amat), jnp.asarray(smat)


def rotation_and_scale_adjustments(means, quats, translations, rotations,
                                   barycentric_weights, scales,
                                   per_gaussian_latent, params,
                                   adjust_scale=True, max_tm=2048):
    """JAX/Pallas equivalent of RotationAndScaleAdjustments.forward."""
    f32 = jnp.float32
    n = means.shape[0]
    lat_dim = per_gaussian_latent.shape[-1]
    d_in = 3 + 4 + 3 + 12 + 3 + 3 + lat_dim
    const_col = d_in                                   # constant-1 column index
    d_pad = ((d_in + 1 + 7) // 8) * 8                  # lane-pad to multiple of 8

    tm = _choose_tm(n, max_tm)
    n_pad = (-(-n // tm)) * tm

    # One lane-contiguous packed input; only THIS array gets row/col padding.
    x = jnp.concatenate([
        means.astype(f32), quats.astype(f32), translations.astype(f32),
        rotations.reshape(n, 12).astype(f32), barycentric_weights.astype(f32),
        scales.astype(f32), per_gaussian_latent.astype(f32),
        jnp.ones((n, 1), f32)], axis=-1)               # (n, d_in + 1)
    x = jnp.pad(x, ((0, n_pad - n), (0, d_pad - (d_in + 1))))

    const_args = _build_constants(params, d_in, d_pad, const_col)

    in_specs = ([pl.BlockSpec((tm, d_pad), lambda i: (i, 0))]
                + [pl.BlockSpec(c.shape, lambda i: (0, 0)) for c in const_args])

    out8 = pl.pallas_call(
        _fused_kernel,
        out_shape=jax.ShapeDtypeStruct((n_pad, OUT_W), f32),
        grid=(n_pad // tm,),
        in_specs=in_specs,
        out_specs=pl.BlockSpec((tm, OUT_W), lambda i: (i, 0)),
        compiler_params=pltpu.CompilerParams(
            dimension_semantics=("parallel",),
            vmem_limit_bytes=40 * 1024 * 1024),
    )(x, *const_args)

    quat_out = out8[:n, 0:4]
    scale_out = out8[:n, 4:7] if adjust_scale else scales
    return quat_out, scale_out


# ----------------------------- reference (plain JAX) -----------------------------

def _quat_mul_ref(q1, q2):
    w1, x1, y1, z1 = q1[:, 0], q1[:, 1], q1[:, 2], q1[:, 3]
    w2, x2, y2, z2 = q2[:, 0], q2[:, 1], q2[:, 2], q2[:, 3]
    return jnp.stack([
        w1 * w2 - x1 * x2 - y1 * y2 - z1 * z2,
        w1 * x2 + x1 * w2 + y1 * z2 - z1 * y2,
        w1 * y2 - x1 * z2 + y1 * w2 + z1 * x2,
        w1 * z2 + x1 * y2 - y1 * x2 + z1 * w2,
    ], axis=-1)


def _forward_ref(means, quats, translations, rotations, barycentric_weights,
                 scales, per_gaussian_latent, params):
    w1, b1, w2, b2, w3, b3 = params
    n = means.shape[0]
    closest = rotations[:, 0]
    x = jnp.concatenate([means, quats, translations, rotations.reshape(n, -1),
                         barycentric_weights, scales, per_gaussian_latent], axis=-1)
    h = jax.nn.silu(x @ w1 + b1)
    h = jax.nn.silu(h @ w2 + b2)
    out = h @ w3 + b3
    return _quat_mul_ref(out[:, :4], closest), out[:, 4:] * 0.001 + scales


# ---------------------------------- main ----------------------------------------

def _init_linear(key, fan_in, fan_out):
    kw, kb = jax.random.split(key)
    bound = 1.0 / jnp.sqrt(fan_in)
    w = jax.random.uniform(kw, (fan_in, fan_out), jnp.float32, -bound, bound)
    b = jax.random.uniform(kb, (fan_out,), jnp.float32, -bound, bound)
    return w, b


if __name__ == "__main__":
    key = jax.random.PRNGKey(0)
    gaussian_latent_dim = 32
    n_gaussians = 256
    d_in = 3 + 4 + 3 + 12 + 3 + 3 + gaussian_latent_dim  # 60

    keys = jax.random.split(key, 16)
    means = jax.random.normal(keys[0], (n_gaussians, 3), jnp.float32)
    quats = jax.random.normal(keys[1], (n_gaussians, 4), jnp.float32)
    translations = jax.random.normal(keys[2], (n_gaussians, 3), jnp.float32)
    rotations = jax.random.normal(keys[3], (n_gaussians, 3, 4), jnp.float32)
    barycentric_weights = jax.random.uniform(keys[4], (n_gaussians, 3), jnp.float32)
    scales = jax.random.normal(keys[5], (n_gaussians, 3), jnp.float32)
    per_gaussian_latent = jax.random.normal(keys[6], (n_gaussians, gaussian_latent_dim),
                                            jnp.float32)

    w1, b1 = _init_linear(keys[7], d_in, 64)
    w2, b2 = _init_linear(keys[8], 64, 64)
    w3, b3 = _init_linear(keys[9], 64, 7)
    params = (w1, b1, w2, b2, w3, b3)

    quat_out, scale_out = rotation_and_scale_adjustments(
        means, quats, translations, rotations, barycentric_weights, scales,
        per_gaussian_latent, params, adjust_scale=True)
    jax.block_until_ready((quat_out, scale_out))

    quat_ref, scale_ref = _forward_ref(
        means, quats, translations, rotations, barycentric_weights, scales,
        per_gaussian_latent, params)

    assert jnp.allclose(quat_out, quat_ref, atol=1e-4, rtol=1e-4)
    assert jnp.allclose(scale_out, scale_ref, atol=1e-4, rtol=1e-4)
    print("KERNEL_OK")
</pallas_src>

<mosaic_0001>
module attributes {stable_mosaic.version = 11 : i64} {
  func.func @_fused_kernel(%arg0: i32, %arg1: memref<64x64xf32, #tpu.memory_space<vmem>>, %arg2: memref<64x64xf32, #tpu.memory_space<vmem>>, %arg3: memref<64x64xf32, #tpu.memory_space<vmem>>, %arg4: memref<1x64xf32, #tpu.memory_space<vmem>>, %arg5: memref<64x32xf32, #tpu.memory_space<vmem>>, %arg6: memref<1x32xf32, #tpu.memory_space<vmem>>, %arg7: memref<64x32xf32, #tpu.memory_space<vmem>>, %arg8: memref<32x8xf32, #tpu.memory_space<vmem>>, %arg9: memref<64x8xf32, #tpu.memory_space<vmem>>) attributes {dimension_semantics = [#tpu.dimension_semantics<parallel>], iteration_bounds = array<i64: 4>, scalar_prefetch = 0 : i64, scratch_operands = 0 : i64, tpu.core_type = #tpu.core_type<tc>, window_params = [{transform_indices = @transform_0, window_bounds = array<i64: 64, 64>}, {pipeline_mode = #tpu.pipeline_mode<synchronous>, transform_indices = @transform_1, window_bounds = array<i64: 64, 64>}, {pipeline_mode = #tpu.pipeline_mode<synchronous>, transform_indices = @transform_2, window_bounds = array<i64: 64, 64>}, {pipeline_mode = #tpu.pipeline_mode<synchronous>, transform_indices = @transform_3, window_bounds = array<i64: 1, 64>}, {pipeline_mode = #tpu.pipeline_mode<synchronous>, transform_indices = @transform_4, window_bounds = array<i64: 64, 32>}, {pipeline_mode = #tpu.pipeline_mode<synchronous>, transform_indices = @transform_5, window_bounds = array<i64: 1, 32>}, {pipeline_mode = #tpu.pipeline_mode<synchronous>, transform_indices = @transform_6, window_bounds = array<i64: 64, 32>}, {pipeline_mode = #tpu.pipeline_mode<synchronous>, transform_indices = @transform_7, window_bounds = array<i64: 32, 8>}, {transform_indices = @transform_8, window_bounds = array<i64: 64, 8>}]} {
    %c0 = arith.constant 0 : index
    %c0_0 = arith.constant 0 : index
    %0 = vector.load %arg1[%c0, %c0_0] : memref<64x64xf32, #tpu.memory_space<vmem>>, vector<64x64xf32>
    %c0_1 = arith.constant 0 : index
    %c0_2 = arith.constant 0 : index
    %1 = vector.load %arg2[%c0_1, %c0_2] : memref<64x64xf32, #tpu.memory_space<vmem>>, vector<64x64xf32>
    %cst = arith.constant dense<0.000000e+00> : vector<64x64xf32>
    %2 = tpu.matmul %0, %1, %cst {dimension_numbers = #tpu.dot_dimension_numbers<[1], [0], [0], [1], [0, 0, 1, 1], [], []>} : vector<64x64xf32>, vector<64x64xf32>, vector<64x64xf32> -> vector<64x64xf32>
    %3 = arith.negf %2 : vector<64x64xf32>
    %4 = math.exp %3 : vector<64x64xf32>
    %cst_3 = arith.constant 1.000000e+00 : f32
    %5 = vector.broadcast %cst_3 : f32 to vector<64x64xf32>
    %6 = arith.addf %5, %4 : vector<64x64xf32>
    %7 = arith.divf %5, %6 : vector<64x64xf32>
    %8 = arith.mulf %2, %7 : vector<64x64xf32>
    %c0_4 = arith.constant 0 : index
    %c0_5 = arith.constant 0 : index
    %9 = vector.load %arg3[%c0_4, %c0_5] : memref<64x64xf32, #tpu.memory_space<vmem>>, vector<64x64xf32>
    %cst_6 = arith.constant dense<0.000000e+00> : vector<64x64xf32>
    %10 = tpu.matmul %8, %9, %cst_6 {dimension_numbers = #tpu.dot_dimension_numbers<[1], [0], [0], [1], [0, 0, 1, 1], [], []>} : vector<64x64xf32>, vector<64x64xf32>, vector<64x64xf32> -> vector<64x64xf32>
    %c0_7 = arith.constant 0 : index
    %c0_8 = arith.constant 0 : index
    %11 = vector.load %arg4[%c0_7, %c0_8] : memref<1x64xf32, #tpu.memory_space<vmem>>, vector<1x64xf32>
    %12 = vector.broadcast %11 : vector<1x64xf32> to vector<64x64xf32>
    %13 = arith.addf %10, %12 : vector<64x64xf32>
    %14 = arith.negf %13 : vector<64x64xf32>
    %15 = math.exp %14 : vector<64x64xf32>
    %cst_9 = arith.constant 1.000000e+00 : f32
    %16 = vector.broadcast %cst_9 : f32 to vector<64x64xf32>
    %17 = arith.addf %16, %15 : vector<64x64xf32>
    %18 = arith.divf %16, %17 : vector<64x64xf32>
    %19 = arith.mulf %13, %18 : vector<64x64xf32>
    %c0_10 = arith.constant 0 : index
    %c0_11 = arith.constant 0 : index
    %20 = vector.load %arg5[%c0_10, %c0_11] : memref<64x32xf32, #tpu.memory_space<vmem>>, vector<64x32xf32>
    %cst_12 = arith.constant dense<0.000000e+00> : vector<64x32xf32>
    %21 = tpu.matmul %19, %20, %cst_12 {dimension_numbers = #tpu.dot_dimension_numbers<[1], [0], [0], [1], [0, 0, 1, 1], [], []>} : vector<64x64xf32>, vector<64x32xf32>, vector<64x32xf32> -> vector<64x32xf32>
    %c0_13 = arith.constant 0 : index
    %c0_14 = arith.constant 0 : index
    %22 = vector.load %arg6[%c0_13, %c0_14] : memref<1x32xf32, #tpu.memory_space<vmem>>, vector<1x32xf32>
    %23 = vector.broadcast %22 : vector<1x32xf32> to vector<64x32xf32>
    %24 = arith.addf %21, %23 : vector<64x32xf32>
    %c0_15 = arith.constant 0 : index
    %c0_16 = arith.constant 0 : index
    %25 = vector.load %arg7[%c0_15, %c0_16] : memref<64x32xf32, #tpu.memory_space<vmem>>, vector<64x32xf32>
    %cst_17 = arith.constant dense<0.000000e+00> : vector<64x32xf32>
    %26 = tpu.matmul %0, %25, %cst_17 {dimension_numbers = #tpu.dot_dimension_numbers<[1], [0], [0], [1], [0, 0, 1, 1], [], []>} : vector<64x64xf32>, vector<64x32xf32>, vector<64x32xf32> -> vector<64x32xf32>
    %27 = arith.mulf %24, %26 : vector<64x32xf32>
    %c0_18 = arith.constant 0 : index
    %c0_19 = arith.constant 0 : index
    %28 = vector.load %arg8[%c0_18, %c0_19] : memref<32x8xf32, #tpu.memory_space<vmem>>, vector<32x8xf32>
    %cst_20 = arith.constant dense<0.000000e+00> : vector<64x8xf32>
    %29 = tpu.matmul %27, %28, %cst_20 {dimension_numbers = #tpu.dot_dimension_numbers<[1], [0], [0], [1], [0, 0, 1, 1], [], []>} : vector<64x32xf32>, vector<32x8xf32>, vector<64x8xf32> -> vector<64x8xf32>
    %c0_21 = arith.constant 0 : index
    %c0_22 = arith.constant 0 : index
    %30 = vector.load %arg9[%c0_21, %c0_22] : memref<64x8xf32, #tpu.memory_space<vmem>>, vector<64x8xf32>
    tpu.vector_store %arg9[%c0_21, %c0_22], %29 {strides = array<i32>} : memref<64x8xf32, #tpu.memory_space<vmem>>, vector<64x8xf32>,
    return
  }
  func.func @transform_0(%arg0: i32) -> (i32, i32) {
    %c0_i32 = arith.constant 0 : i32
    %c0_i32_0 = arith.constant 0 : i32
    return %arg0, %c0_i32 : i32, i32
  }
  func.func @transform_1(%arg0: i32) -> (i32, i32) {
    %c0_i32 = arith.constant 0 : i32
    %c0_i32_0 = arith.constant 0 : i32
    %c0_i32_1 = arith.constant 0 : i32
    return %c0_i32, %c0_i32_0 : i32, i32
  }
  func.func @transform_2(%arg0: i32) -> (i32, i32) {
    %c0_i32 = arith.constant 0 : i32
    %c0_i32_0 = arith.constant 0 : i32
    %c0_i32_1 = arith.constant 0 : i32
    return %c0_i32, %c0_i32_0 : i32, i32
  }
  func.func @transform_3(%arg0: i32) -> (i32, i32) {
    %c0_i32 = arith.constant 0 : i32
    %c0_i32_0 = arith.constant 0 : i32
    %c0_i32_1 = arith.constant 0 : i32
    return %c0_i32, %c0_i32_0 : i32, i32
  }
  func.func @transform_4(%arg0: i32) -> (i32, i32) {
    %c0_i32 = arith.constant 0 : i32
    %c0_i32_0 = arith.constant 0 : i32
    %c0_i32_1 = arith.constant 0 : i32
    return %c0_i32, %c0_i32_0 : i32, i32
  }
  func.func @transform_5(%arg0: i32) -> (i32, i32) {
    %c0_i32 = arith.constant 0 : i32
    %c0_i32_0 = arith.constant 0 : i32
    %c0_i32_1 = arith.constant 0 : i32
    return %c0_i32, %c0_i32_0 : i32, i32
  }
  func.func @transform_6(%arg0: i32) -> (i32, i32) {
    %c0_i32 = arith.constant 0 : i32
    %c0_i32_0 = arith.constant 0 : i32
    %c0_i32_1 = arith.constant 0 : i32
    return %c0_i32, %c0_i32_0 : i32, i32
  }
  func.func @transform_7(%arg0: i32) -> (i32, i32) {
    %c0_i32 = arith.constant 0 : i32
    %c0_i32_0 = arith.constant 0 : i32
    %c0_i32_1 = arith.constant 0 : i32
    return %c0_i32, %c0_i32_0 : i32, i32
  }
  func.func @transform_8(%arg0: i32) -> (i32, i32) {
    %c0_i32 = arith.constant 0 : i32
    %c0_i32_0 = arith.constant 0 : i32
    return %arg0, %c0_i32 : i32, i32
  }
}

</mosaic_0001>

<llo_original>
// kernel: tpu_custom_call.1
$region0: #{tpu_custom_call.1}
  #allocation0 [shape = 'u32[]', space=smem, size = 0x4, offset = 0x4, fixed_abs, tag = 'smem constant byte address 0x4 - core index']
  #allocation1 [shape = 'u32[144,128]{1,0:T(1,128)}', space=vmem, size = 0x12000, scoped, tag = 'internal scratch']
  %s0 = inlined_call_operand.vmem [shape: f32[256,64], index: 0, kind: input, shape index: {}]
  %s1 = inlined_call_operand.vmem [shape: f32[64,64], index: 1, kind: input, shape index: {}]
  %s2 = inlined_call_operand.vmem [shape: f32[64,64], index: 2, kind: input, shape index: {}]
  %s3 = inlined_call_operand.vmem [shape: f32[1,64], index: 3, kind: input, shape index: {}]
  %s4 = inlined_call_operand.vmem [shape: f32[64,32], index: 4, kind: input, shape index: {}]
  %s5 = inlined_call_operand.vmem [shape: f32[1,32], index: 5, kind: input, shape index: {}]
  %s6 = inlined_call_operand.vmem [shape: f32[64,32], index: 6, kind: input, shape index: {}]
  %s7 = inlined_call_operand.vmem [shape: f32[32,8], index: 7, kind: input, shape index: {}]
  %s8 = inlined_call_operand.vmem [shape: f32[256,8], index: 8, kind: output, shape index: {}]
  %s9 = sld [smem:[#allocation0]]
  $region65: #{tpu_custom_call.1} parent=0
    _
  %s11 = ssub.s32 1, %s9
  %s12 = scalar_select 0, %s11, %s9
  loop: start=0, step=1, limit=6
  $region2: #{tpu_custom_call.1} parent=0 // loop_pre_header
    _
  $region3: #{tpu_custom_call.1} parent=0 // loop_header
    %s14 = sphi 0, %s18
    %p15 = scmp.ge.s32.totalorder %s14, 6
    %s24 = sphi 0, %s26
    %s27 = sphi 0, %s24
    %s28 = sphi 0, %s27
    %s44 = sphi 0, %s28
    %s48 = sphi 0, %s48
    %s50 = sphi 0, %s48
    %s51 = sphi 0, %s50
    %s65 = sphi 0, %s51
    %s69 = sphi 0, %s69
    %s71 = sphi 0, %s69
    %s72 = sphi 0, %s71
    %s86 = sphi 0, %s72
    %s90 = sphi 0, %s90
    %s92 = sphi 0, %s90
    %s93 = sphi 0, %s92
    %s107 = sphi 0, %s93
    %s111 = sphi 0, %s111
    %s113 = sphi 0, %s111
    %s114 = sphi 0, %s113
    %s128 = sphi 0, %s114
    %s132 = sphi 0, %s132
    %s134 = sphi 0, %s132
    %s135 = sphi 0, %s134
    %s149 = sphi 0, %s135
    %s153 = sphi 0, %s153
    %s155 = sphi 0, %s153
    %s156 = sphi 0, %s155
    %s170 = sphi 0, %s156
    %s174 = sphi 0, %s174
    %s176 = sphi 0, %s174
    %s177 = sphi 0, %s176
    %s191 = sphi 0, %s177
    %s197 = sphi 0, %s199
    %s200 = sphi 0, %s197
    %s201 = sphi 0, %s200
    %s217 = sphi 0, %s201
  $region4: #{tpu_custom_call.1} parent=0 // loop_header_branch
    %17 = sbr.rel (%p15) target = $region8
  $region5: #{tpu_custom_call.1} parent=0 // loop_body
    %s19 = ssub.s32 %s14, 1
    %s20 = ssub.s32 %s14, 2
    %s21 = sadd.s32 %s14, 1
    %s22 = ssub.s32 %s14, %s21
    %p23 = scmp.eq.s32.totalorder %s22, 0
    %s25 = sadd.s32 %s24, 1
    %s26 = scalar_select %p23, %s24, %s25
    %p29 = pneg %p23
    %p30 = scmp.eq.s32.totalorder %s14, 3
    %p31 = por %p29, %p30
    %p32 = scmp.ne.s32.totalorder %s24, %s27
    %p33 = scmp.eq.s32.totalorder %s14, 0
    %p34 = por %p32, %p33
    %p35 = scmp.ne.s32.totalorder %s24, %s27
    %p36 = scmp.eq.s32.totalorder %s19, 3
    %p37 = por %p35, %p36
    %p38 = scmp.ne.s32.totalorder %s27, %s28
    %p39 = scmp.eq.s32.totalorder %s19, 0
    %p40 = por %p38, %p39
    %p41 = scmp.ne.s32.totalorder %s27, %s28
    %p42 = scmp.eq.s32.totalorder %s20, 3
    %p43 = por %p41, %p42
    %p45 = scmp.ne.s32.totalorder %s28, %s44
    %p46 = scmp.eq.s32.totalorder %s20, 0
    %p47 = por %p45, %p46
    %s49 = sadd.s32 %s48, 1
    %p52 = scmp.eq.s32.totalorder %s14, 3
    %p53 = scmp.ne.s32.totalorder %s48, %s50
    %p54 = scmp.eq.s32.totalorder %s14, 0
    %p55 = por %p53, %p54
    %p56 = scmp.ne.s32.totalorder %s48, %s50
    %p57 = scmp.eq.s32.totalorder %s19, 3
    %p58 = por %p56, %p57
    %p59 = scmp.ne.s32.totalorder %s50, %s51
    %p60 = scmp.eq.s32.totalorder %s19, 0
    %p61 = por %p59, %p60
    %p62 = scmp.ne.s32.totalorder %s50, %s51
    %p63 = scmp.eq.s32.totalorder %s20, 3
    %p64 = por %p62, %p63
    %p66 = scmp.ne.s32.totalorder %s51, %s65
    %p67 = scmp.eq.s32.totalorder %s20, 0
    %p68 = por %p66, %p67
    %s70 = sadd.s32 %s69, 1
    %p73 = scmp.eq.s32.totalorder %s14, 3
    %p74 = scmp.ne.s32.totalorder %s69, %s71
    %p75 = scmp.eq.s32.totalorder %s14, 0
    %p76 = por %p74, %p75
    %p77 = scmp.ne.s32.totalorder %s69, %s71
    %p78 = scmp.eq.s32.totalorder %s19, 3
    %p79 = por %p77, %p78
    %p80 = scmp.ne.s32.totalorder %s71, %s72
    %p81 = scmp.eq.s32.totalorder %s19, 0
    %p82 = por %p80, %p81
    %p83 = scmp.ne.s32.totalorder %s71, %s72
    %p84 = scmp.eq.s32.totalorder %s20, 3
    %p85 = por %p83, %p84
    %p87 = scmp.ne.s32.totalorder %s72, %s86
    %p88 = scmp.eq.s32.totalorder %s20, 0
    %p89 = por %p87, %p88
    %s91 = sadd.s32 %s90, 1
    %p94 = scmp.eq.s32.totalorder %s14, 3
    %p95 = scmp.ne.s32.totalorder %s90, %s92
    %p96 = scmp.eq.s32.totalorder %s14, 0
    %p97 = por %p95, %p96
    %p98 = scmp.ne.s32.totalorder %s90, %s92
    %p99 = scmp.eq.s32.totalorder %s19, 3
    %p100 = por %p98, %p99
    %p101 = scmp.ne.s32.totalorder %s92, %s93
    %p102 = scmp.eq.s32.totalorder %s19, 0
    %p103 = por %p101, %p102
    %p104 = scmp.ne.s32.totalorder %s92, %s93
    %p105 = scmp.eq.s32.totalorder %s20, 3
    %p106 = por %p104, %p105
    %p108 = scmp.ne.s32.totalorder %s93, %s107
    %p109 = scmp.eq.s32.totalorder %s20, 0
    %p110 = por %p108, %p109
    %s112 = sadd.s32 %s111, 1
    %p115 = scmp.eq.s32.totalorder %s14, 3
    %p116 = scmp.ne.s32.totalorder %s111, %s113
    %p117 = scmp.eq.s32.totalorder %s14, 0
    %p118 = por %p116, %p117
    %p119 = scmp.ne.s32.totalorder %s111, %s113
    %p120 = scmp.eq.s32.totalorder %s19, 3
    %p121 = por %p119, %p120
    %p122 = scmp.ne.s32.totalorder %s113, %s114
    %p123 = scmp.eq.s32.totalorder %s19, 0
    %p124 = por %p122, %p123
    %p125 = scmp.ne.s32.totalorder %s113, %s114
    %p126 = scmp.eq.s32.totalorder %s20, 3
    %p127 = por %p125, %p126
    %p129 = scmp.ne.s32.totalorder %s114, %s128
    %p130 = scmp.eq.s32.totalorder %s20, 0
    %p131 = por %p129, %p130
    %s133 = sadd.s32 %s132, 1
    %p136 = scmp.eq.s32.totalorder %s14, 3
    %p137 = scmp.ne.s32.totalorder %s132, %s134
    %p138 = scmp.eq.s32.totalorder %s14, 0
    %p139 = por %p137, %p138
    %p140 = scmp.ne.s32.totalorder %s132, %s134
    %p141 = scmp.eq.s32.totalorder %s19, 3
    %p142 = por %p140, %p141
    %p143 = scmp.ne.s32.totalorder %s134, %s135
    %p144 = scmp.eq.s32.totalorder %s19, 0
    %p145 = por %p143, %p144
    %p146 = scmp.ne.s32.totalorder %s134, %s135
    %p147 = scmp.eq.s32.totalorder %s20, 3
    %p148 = por %p146, %p147
    %p150 = scmp.ne.s32.totalorder %s135, %s149
    %p151 = scmp.eq.s32.totalorder %s20, 0
    %p152 = por %p150, %p151
    %s154 = sadd.s32 %s153, 1
    %p157 = scmp.eq.s32.totalorder %s14, 3
    %p158 = scmp.ne.s32.totalorder %s153, %s155
    %p159 = scmp.eq.s32.totalorder %s14, 0
    %p160 = por %p158, %p159
    %p161 = scmp.ne.s32.totalorder %s153, %s155
    %p162 = scmp.eq.s32.totalorder %s19, 3
    %p163 = por %p161, %p162
    %p164 = scmp.ne.s32.totalorder %s155, %s156
    %p165 = scmp.eq.s32.totalorder %s19, 0
    %p166 = por %p164, %p165
    %p167 = scmp.ne.s32.totalorder %s155, %s156
    %p168 = scmp.eq.s32.totalorder %s20, 3
    %p169 = por %p167, %p168
    %p171 = scmp.ne.s32.totalorder %s156, %s170
    %p172 = scmp.eq.s32.totalorder %s20, 0
    %p173 = por %p171, %p172
    %s175 = sadd.s32 %s174, 1
    %p178 = scmp.eq.s32.totalorder %s14, 3
    %p179 = scmp.ne.s32.totalorder %s174, %s176
    %p180 = scmp.eq.s32.totalorder %s14, 0
    %p181 = por %p179, %p180
    %p182 = scmp.ne.s32.totalorder %s174, %s176
    %p183 = scmp.eq.s32.totalorder %s19, 3
    %p184 = por %p182, %p183
    %p185 = scmp.ne.s32.totalorder %s176, %s177
    %p186 = scmp.eq.s32.totalorder %s19, 0
    %p187 = por %p185, %p186
    %p188 = scmp.ne.s32.totalorder %s176, %s177
    %p189 = scmp.eq.s32.totalorder %s20, 3
    %p190 = por %p188, %p189
    %p192 = scmp.ne.s32.totalorder %s177, %s191
    %p193 = scmp.eq.s32.totalorder %s20, 0
    %p194 = por %p192, %p193
    %s195 = ssub.s32 %s14, %s21
    %p196 = scmp.eq.s32.totalorder %s195, 0
    %s198 = sadd.s32 %s197, 1
    %s199 = scalar_select %p196, %s197, %s198
    %p202 = pneg %p196
    %p203 = scmp.eq.s32.totalorder %s14, 3
    %p204 = por %p202, %p203
    %p205 = scmp.ne.s32.totalorder %s197, %s200
    %p206 = scmp.eq.s32.totalorder %s14, 0
    %p207 = por %p205, %p206
    %p208 = scmp.ne.s32.totalorder %s197, %s200
    %p209 = scmp.eq.s32.totalorder %s19, 3
    %p210 = por %p208, %p209
    %p211 = scmp.ne.s32.totalorder %s200, %s201
    %p212 = scmp.eq.s32.totalorder %s19, 0
    %p213 = por %p211, %p212
    %p214 = scmp.ne.s32.totalorder %s200, %s201
    %p215 = scmp.eq.s32.totalorder %s20, 3
    %p216 = por %p214, %p215
    %p218 = scmp.ne.s32.totalorder %s201, %s217
    %p219 = scmp.eq.s32.totalorder %s20, 0
    %p220 = por %p218, %p219
    %p221 = scmp.le.s32.totalorder 1, %s14
    %p222 = scmp.lt.s32.totalorder %s14, 5
    %p223 = pnand %p221, %p222
    %p224 = pneg %p223
    // Predicated region
    $region9: #{tpu_custom_call.1} parent=5 // pred_check
      _
    $region10: #{tpu_custom_call.1} parent=5 // pred_check_branch
      %226 = sbr.rel (%p223) target = $region12
    $region11: #{tpu_custom_call.1} parent=5 // pred_region
      %s227 = ssub.s32 %s14, 1
      // Predicated region
      $region13: #{tpu_custom_call.1} parent=11 // pred_check
        %p228 = pneg %p61
      $region14: #{tpu_custom_call.1} parent=11 // pred_check_branch
        %230 = sbr.rel (%p228) target = $region16
      $region15: #{tpu_custom_call.1} parent=11 // pred_region
        _
      $region16: #{tpu_custom_call.1} parent=11 // pred_fallthru
        _
      // Predicated region
      $region17: #{tpu_custom_call.1} parent=11 // pred_check
        %p231 = pneg %p82
      $region18: #{tpu_custom_call.1} parent=11 // pred_check_branch
        %233 = sbr.rel (%p231) target = $region20
      $region19: #{tpu_custom_call.1} parent=11 // pred_region
        _
      $region20: #{tpu_custom_call.1} parent=11 // pred_fallthru
        _
      // Predicated region
      $region21: #{tpu_custom_call.1} parent=11 // pred_check
        %p234 = pneg %p103
      $region22: #{tpu_custom_call.1} parent=11 // pred_check_branch
        %236 = sbr.rel (%p234) target = $region24
      $region23: #{tpu_custom_call.1} parent=11 // pred_region
        _
      $region24: #{tpu_custom_call.1} parent=11 // pred_fallthru
        _
      // Predicated region
      $region25: #{tpu_custom_call.1} parent=11 // pred_check
        %p237 = pneg %p124
      $region26: #{tpu_custom_call.1} parent=11 // pred_check_branch
        %239 = sbr.rel (%p237) target = $region28
      $region27: #{tpu_custom_call.1} parent=11 // pred_region
        _
      $region28: #{tpu_custom_call.1} parent=11 // pred_fallthru
        _
      // Predicated region
      $region29: #{tpu_custom_call.1} parent=11 // pred_check
        %p240 = pneg %p145
      $region30: #{tpu_custom_call.1} parent=11 // pred_check_branch
        %242 = sbr.rel (%p240) target = $region32
      $region31: #{tpu_custom_call.1} parent=11 // pred_region
        _
      $region32: #{tpu_custom_call.1} parent=11 // pred_fallthru
        _
      // Predicated region
      $region33: #{tpu_custom_call.1} parent=11 // pred_check
        %p243 = pneg %p166
      $region34: #{tpu_custom_call.1} parent=11 // pred_check_branch
        %245 = sbr.rel (%p243) target = $region36
      $region35: #{tpu_custom_call.1} parent=11 // pred_region
        _
      $region36: #{tpu_custom_call.1} parent=11 // pred_fallthru
        _
      // Predicated region
      $region37: #{tpu_custom_call.1} parent=11 // pred_check
        %p246 = pneg %p187
      $region38: #{tpu_custom_call.1} parent=11 // pred_check_branch
        %248 = sbr.rel (%p246) target = $region40
      $region39: #{tpu_custom_call.1} parent=11 // pred_region
        _
      $region40: #{tpu_custom_call.1} parent=11 // pred_fallthru
        _
    $region12: #{tpu_custom_call.1} parent=5 // pred_fallthru
      _
    %p249 = scmp.lt.s32.totalorder %s14, 4
    // Predicated region
    $region41: #{tpu_custom_call.1} parent=5 // pred_check
      %p250 = pneg %p249
    $region42: #{tpu_custom_call.1} parent=5 // pred_check_branch
      %252 = sbr.rel (%p250) target = $region44
    $region43: #{tpu_custom_call.1} parent=5 // pred_region
      // Predicated region
      $region45: #{tpu_custom_call.1} parent=43 // pred_check
        %p253 = pneg %p34
      $region46: #{tpu_custom_call.1} parent=43 // pred_check_branch
        %255 = sbr.rel (%p253) target = $region48
      $region47: #{tpu_custom_call.1} parent=43 // pred_region
        %s256 = smul.u32 8, %s14
        %p257 = scmp.lt.s32.totalorder %s256, 31
        %s258 = scalar_select %p257, %s256, 31
        %s259 = smul.addr %s258, 8
        %s260 = scalar_lea.vmem %s0, %s259
        %s261 = smul.u32 8, %s14
      $region48: #{tpu_custom_call.1} parent=43 // pred_fallthru
        _
    $region44: #{tpu_custom_call.1} parent=5 // pred_fallthru
      _
    %p262 = scmp.le.s32.totalorder 1, %s14
    %p263 = scmp.lt.s32.totalorder %s14, 5
    %p264 = pnand %p262, %p263
    %p265 = pneg %p264
    // Predicated region
    $region49: #{tpu_custom_call.1} parent=5 // pred_check
      _
    $region50: #{tpu_custom_call.1} parent=5 // pred_check_branch
      %267 = sbr.rel (%p264) target = $region52
    $region51: #{tpu_custom_call.1} parent=5 // pred_region
      %s268 = ssub.s32 %s14, 1
      %s269 = smul.u32 8, %s19
      %p270 = scmp.lt.s32.totalorder %s269, 31
      %s271 = scalar_select %p270, %s269, 31
      %s272 = smul.addr %s271, 8
      %s273 = scalar_lea.vmem %s0, %s272
      %p274 = pneg %p40
      %p275 = pneg %p37
      %p276 = pneg %p61
      %p277 = pneg %p58
      %p278 = pneg %p82
      %p279 = pneg %p79
      %p280 = pneg %p103
      %p281 = pneg %p100
      %p282 = pneg %p124
      %p283 = pneg %p121
      %p284 = pneg %p145
      %p285 = pneg %p142
      %p286 = pneg %p166
      %p287 = pneg %p163
      %p288 = pneg %p187
      %p289 = pneg %p184
      %p290 = pneg %p213
      %p291 = pneg %p210
      %s292 = smul.u32 8, %s19
      %p293 = scmp.lt.s32.totalorder %s292, 31
      %s294 = scalar_select %p293, %s292, 31
      %s295 = smul.addr %s294, 8
      %s296 = scalar_lea.vmem %s8, %s295
      %s297 = smul.u32 8, %s19
      %p298 = scmp.lt.s32.totalorder %s297, 31
      %s299 = scalar_select %p298, %s297, 31
      %s300 = smul.addr %s299, 8
      %s301 = scalar_lea.vmem %s0, %s300
      %s302 = smul.u32 8, %s19
      %s303 = smul.u32 8, %s19
      %p304 = scmp.lt.s32.totalorder %s303, 31
      %s305 = scalar_select %p304, %s303, 31
      %s306 = smul.addr %s305, 8
      %s307 = scalar_lea.vmem %s8, %s306
      %s308 = smul.u32 8, %s19
      %v309 = vld [vmem:[%s301] sm:$0xff]
      %v310 = vld [vmem:[%s301 + $0x8] sm:$0xff]
      %v311 = vld [vmem:[%s301 + $0x10] sm:$0xff]
      %v312 = vld [vmem:[%s301 + $0x18] sm:$0xff]
      %v313 = vld [vmem:[%s301 + $0x20] sm:$0xff]
      %v314 = vld [vmem:[%s301 + $0x28] sm:$0xff]
      %v315 = vld [vmem:[%s301 + $0x30] sm:$0xff]
      %v316 = vld [vmem:[%s301 + $0x38] sm:$0xff]
      %v317 = vld [vmem:[%s1] sm:$0xff]
      %v318 = vld [vmem:[%s1 + $0x8] sm:$0xff]
      %v319 = vld [vmem:[%s1 + $0x10] sm:$0xff]
      %v320 = vld [vmem:[%s1 + $0x18] sm:$0xff]
      %v321 = vld [vmem:[%s1 + $0x20] sm:$0xff]
      %v322 = vld [vmem:[%s1 + $0x28] sm:$0xff]
      %v323 = vld [vmem:[%s1 + $0x30] sm:$0xff]
      %v324 = vld [vmem:[%s1 + $0x38] sm:$0xff]
      %vm325 = vcmask 523264
      %v327 = vsel %vm325, %v309, 0
      %v330 = vsel %vm325, %v310, 0
      %v333 = vsel %vm325, %v311, 0
      %v336 = vsel %vm325, %v312, 0
      %v339 = vsel %vm325, %v313, 0
      %v342 = vsel %vm325, %v314, 0
      %v345 = vsel %vm325, %v315, 0
      %v348 = vsel %vm325, %v316, 0
      %350 = vmatprep.subr.mxu0 0.0
      %351 = vmatpush1.msra.mxu0 %v317
      %352 = vmatprep.subr.mxu0 0.0
      %353 = vmatpush1.msra.mxu0 %v318
      %354 = vmatprep.subr.mxu0 0.0
      %355 = vmatpush1.msra.mxu0 %v319
      %356 = vmatprep.subr.mxu0 0.0
      %357 = vmatpush1.msra.mxu0 %v320
      %358 = vmatprep.subr.mxu0 0.0
      %359 = vmatpush1.msra.mxu0 %v321
      %360 = vmatprep.subr.mxu0 0.0
      %361 = vmatpush1.msra.mxu0 %v322
      %362 = vmatprep.subr.mxu0 0.0
      %363 = vmatpush1.msra.mxu0 %v323
      %364 = vmatprep.subr.mxu0 0.0
      %365 = vmatpush1.msra.mxu0 %v324
      %366 = vmatprep.subr.mxu0 0.0
      %367 = vmatpush1.msra.mxu0 0.0
      %368 = vmatprep.subr.mxu0 0.0
      %369 = vmatpush1.msra.mxu0 0.0
      %370 = vmatprep.subr.mxu0 0.0
      %371 = vmatpush1.msra.mxu0 0.0
      %372 = vmatprep.subr.mxu0 0.0
      %373 = vmatpush1.msra.mxu0 0.0
      %374 = vmatprep.subr.mxu0 0.0
      %375 = vmatpush1.msra.mxu0 0.0
      %376 = vmatprep.subr.mxu0 0.0
      %377 = vmatpush1.msra.mxu0 0.0
      %378 = vmatprep.subr.mxu0 0.0
      %379 = vmatpush1.msra.mxu0 0.0
      %380 = vmatprep.subr.mxu0 0.0
      %381 = vmatpush1.msra.mxu0 0.0
      %382 = vmatprep.subr.mxu0 0.0
      %383 = vmatpush1.msra.mxu0 0.0
      %384 = vmatprep.subr.mxu0 0.0
      %385 = vmatpush1.msra.mxu0 0.0
      %386 = vmatprep.subr.mxu0 0.0
      %387 = vmatpush1.msra.mxu0 0.0
      %388 = vmatprep.subr.mxu0 0.0
      %389 = vmatpush1.msra.mxu0 0.0
      %390 = vmatprep.subr.mxu0 0.0
      %391 = vmatpush1.msra.mxu0 0.0
      %392 = vmatprep.subr.mxu0 0.0
      %393 = vmatpush1.msra.mxu0 0.0
      %394 = vmatprep.subr.mxu0 0.0
      %395 = vmatpush1.msra.mxu0 0.0
      %396 = vmatprep.subr.mxu0 0.0
      %397 = vmatpush1.msra.mxu0 0.0
      %398 = vmatprep.subr.mxu0 0.0
      %399 = vmatpush1.msra.mxu0 0.0
      %400 = vmatprep.subr.mxu0 0.0
      %401 = vmatpush1.msra.mxu0 0.0
      %402 = vmatprep.subr.mxu0 0.0
      %403 = vmatpush1.msra.mxu0 0.0
      %404 = vmatprep.subr.mxu0 0.0
      %405 = vmatpush1.msra.mxu0 0.0
      %406 = vmatprep.subr.mxu0 0.0
      %407 = vmatpush1.msra.mxu0 0.0
      %408 = vmatprep.subr.mxu0 0.0
      %409 = vmatpush1.msra.mxu0 0.0
      %410 = vmatprep.subr.mxu0 0.0
      %411 = vmatpush1.msra.mxu0 0.0
      %412 = vmatprep.subr.mxu0 0.0
      %413 = vmatpush1.msra.mxu0 0.0
      %414 = vmatprep.mubr.f32.mxu0 0.0
      %415 = vmatmul.mubr.f32.gmra.mrb[0].mxu0 %v327
      %v416 = vpop.f32.mrb[0].mxu0
      %v417 = vadd.f32 0.0, %v416
      %v418 = vpop.f32.mrb[0].mxu0
      %419 = vmatprep.mubr.f32.mxu0 0.0
      %420 = vmatmul.mubr.f32.gmra.mrb[0].mxu0 %v330
      %v421 = vpop.f32.mrb[0].mxu0
      %v422 = vadd.f32 0.0, %v421
      %v423 = vpop.f32.mrb[0].mxu0
      %424 = vmatprep.mubr.f32.mxu0 0.0
      %425 = vmatmul.mubr.f32.gmra.mrb[0].mxu0 %v333
      %v426 = vpop.f32.mrb[0].mxu0
      %v427 = vadd.f32 0.0, %v426
      %v428 = vpop.f32.mrb[0].mxu0
      %429 = vmatprep.mubr.f32.mxu0 0.0
      %430 = vmatmul.mubr.f32.gmra.mrb[0].mxu0 %v336
      %v431 = vpop.f32.mrb[0].mxu0
      %v432 = vadd.f32 0.0, %v431
      %v433 = vpop.f32.mrb[0].mxu0
      %434 = vmatprep.mubr.f32.mxu0 0.0
      %435 = vmatmul.mubr.f32.gmra.mrb[0].mxu0 %v339
      %v436 = vpop.f32.mrb[0].mxu0
      %v437 = vadd.f32 0.0, %v436
      %v438 = vpop.f32.mrb[0].mxu0
      %439 = vmatprep.mubr.f32.mxu0 0.0
      %440 = vmatmul.mubr.f32.gmra.mrb[0].mxu0 %v342
      %v441 = vpop.f32.mrb[0].mxu0
      %v442 = vadd.f32 0.0, %v441
      %v443 = vpop.f32.mrb[0].mxu0
      %444 = vmatprep.mubr.f32.mxu0 0.0
      %445 = vmatmul.mubr.f32.gmra.mrb[0].mxu0 %v345
      %v446 = vpop.f32.mrb[0].mxu0
      %v447 = vadd.f32 0.0, %v446
      %v448 = vpop.f32.mrb[0].mxu0
      %449 = vmatprep.mubr.f32.mxu0 0.0
      %450 = vmatmul.mubr.f32.gmra.mrb[0].mxu0 %v348
      %v451 = vpop.f32.mrb[0].mxu0
      %v452 = vadd.f32 0.0, %v451
      %v453 = vpop.f32.mrb[0].mxu0
      %454 = vdwg.mxu0
      %v455 = vxor.u32 %v417, 2147483648
      %v456 = vxor.u32 %v422, 2147483648
      %v457 = vxor.u32 %v427, 2147483648
      %v458 = vxor.u32 %v432, 2147483648
      %v459 = vxor.u32 %v437, 2147483648
      %v460 = vxor.u32 %v442, 2147483648
      %v461 = vxor.u32 %v447, 2147483648
      %v462 = vxor.u32 %v452, 2147483648
      %v463 = vmul.f32 %v455, 1.442695
      %v464 = vpow.pop %v463
      %v465 = vmul.f32 %v456, 1.442695
      %v466 = vpow.pop %v465
      %v467 = vmul.f32 %v457, 1.442695
      %v468 = vpow.pop %v467
      %v469 = vmul.f32 %v458, 1.442695
      %v470 = vpow.pop %v469
      %v471 = vmul.f32 %v459, 1.442695
      %v472 = vpow.pop %v471
      %v473 = vmul.f32 %v460, 1.442695
      %v474 = vpow.pop %v473
      %v475 = vmul.f32 %v461, 1.442695
      %v476 = vpow.pop %v475
      %v477 = vmul.f32 %v462, 1.442695
      %v478 = vpow.pop %v477
      %v479 = vadd.f32 %v464, 1.0
      %v480 = vadd.f32 %v466, 1.0
      %v481 = vadd.f32 %v468, 1.0
      %v482 = vadd.f32 %v470, 1.0
      %v483 = vadd.f32 %v472, 1.0
      %v484 = vadd.f32 %v474, 1.0
      %v485 = vadd.f32 %v476, 1.0
      %v486 = vadd.f32 %v478, 1.0
      %v487 = vrcp.pop %v479
      %v488 = vmul.f32 1.0, %v487
      %v489 = vrcp.pop %v480
      %v490 = vmul.f32 1.0, %v489
      %v491 = vrcp.pop %v481
      %v492 = vmul.f32 1.0, %v491
      %v493 = vrcp.pop %v482
      %v494 = vmul.f32 1.0, %v493
      %v495 = vrcp.pop %v483
      %v496 = vmul.f32 1.0, %v495
      %v497 = vrcp.pop %v484
      %v498 = vmul.f32 1.0, %v497
      %v499 = vrcp.pop %v485
      %v500 = vmul.f32 1.0, %v499
      %v501 = vrcp.pop %v486
      %v502 = vmul.f32 1.0, %v501
      %v503 = vmul.f32 %v417, %v488
      %v504 = vmul.f32 %v422, %v490
      %v505 = vmul.f32 %v427, %v492
      %v506 = vmul.f32 %v432, %v494
      %v507 = vmul.f32 %v437, %v496
      %v508 = vmul.f32 %v442, %v498
      %v509 = vmul.f32 %v447, %v500
      %v510 = vmul.f32 %v452, %v502
      %v511 = vld [vmem:[%s2] sm:$0xff]
      %v512 = vld [vmem:[%s2 + $0x8] sm:$0xff]
      %v513 = vld [vmem:[%s2 + $0x10] sm:$0xff]
      %v514 = vld [vmem:[%s2 + $0x18] sm:$0xff]
      %v515 = vld [vmem:[%s2 + $0x20] sm:$0xff]
      %v516 = vld [vmem:[%s2 + $0x28] sm:$0xff]
      %v517 = vld [vmem:[%s2 + $0x30] sm:$0xff]
      %v518 = vld [vmem:[%s2 + $0x38] sm:$0xff]
      %v519 = vld [vmem:[%s3] sm:$0x1]
      %v521 = vlaneseq
      %v522 = vshrl.u32 %v521, 7
      %v523 = vsub.s32 0, %v522
      %v524 = vrot.slane %v519, %v523
      %v527 = vsel %vm325, %v503, 0
      %v530 = vsel %vm325, %v504, 0
      %v533 = vsel %vm325, %v505, 0
      %v536 = vsel %vm325, %v506, 0
      %v539 = vsel %vm325, %v507, 0
      %v542 = vsel %vm325, %v508, 0
      %v545 = vsel %vm325, %v509, 0
      %v548 = vsel %vm325, %v510, 0
      %550 = vmatprep.subr.mxu0 0.0
      %551 = vmatpush1.msra.mxu0 %v511
      %552 = vmatprep.subr.mxu0 0.0
      %553 = vmatpush1.msra.mxu0 %v512
      %554 = vmatprep.subr.mxu0 0.0
      %555 = vmatpush1.msra.mxu0 %v513
      %556 = vmatprep.subr.mxu0 0.0
      %557 = vmatpush1.msra.mxu0 %v514
      %558 = vmatprep.subr.mxu0 0.0
      %559 = vmatpush1.msra.mxu0 %v515
      %560 = vmatprep.subr.mxu0 0.0
      %561 = vmatpush1.msra.mxu0 %v516
      %562 = vmatprep.subr.mxu0 0.0
      %563 = vmatpush1.msra.mxu0 %v517
      %564 = vmatprep.subr.mxu0 0.0
      %565 = vmatpush1.msra.mxu0 %v518
      %566 = vmatprep.subr.mxu0 0.0
      %567 = vmatpush1.msra.mxu0 0.0
      %568 = vmatprep.subr.mxu0 0.0
      %569 = vmatpush1.msra.mxu0 0.0
      %570 = vmatprep.subr.mxu0 0.0
      %571 = vmatpush1.msra.mxu0 0.0
      %572 = vmatprep.subr.mxu0 0.0
      %573 = vmatpush1.msra.mxu0 0.0
      %574 = vmatprep.subr.mxu0 0.0
      %575 = vmatpush1.msra.mxu0 0.0
      %576 = vmatprep.subr.mxu0 0.0
      %577 = vmatpush1.msra.mxu0 0.0
      %578 = vmatprep.subr.mxu0 0.0
      %579 = vmatpush1.msra.mxu0 0.0
      %580 = vmatprep.subr.mxu0 0.0
      %581 = vmatpush1.msra.mxu0 0.0
      %582 = vmatprep.subr.mxu0 0.0
      %583 = vmatpush1.msra.mxu0 0.0
      %584 = vmatprep.subr.mxu0 0.0
      %585 = vmatpush1.msra.mxu0 0.0
      %586 = vmatprep.subr.mxu0 0.0
      %587 = vmatpush1.msra.mxu0 0.0
      %588 = vmatprep.subr.mxu0 0.0
      %589 = vmatpush1.msra.mxu0 0.0
      %590 = vmatprep.subr.mxu0 0.0
      %591 = vmatpush1.msra.mxu0 0.0
      %592 = vmatprep.subr.mxu0 0.0
      %593 = vmatpush1.msra.mxu0 0.0
      %594 = vmatprep.subr.mxu0 0.0
      %595 = vmatpush1.msra.mxu0 0.0
      %596 = vmatprep.subr.mxu0 0.0
      %597 = vmatpush1.msra.mxu0 0.0
      %598 = vmatprep.subr.mxu0 0.0
      %599 = vmatpush1.msra.mxu0 0.0
      %600 = vmatprep.subr.mxu0 0.0
      %601 = vmatpush1.msra.mxu0 0.0
      %602 = vmatprep.subr.mxu0 0.0
      %603 = vmatpush1.msra.mxu0 0.0
      %604 = vmatprep.subr.mxu0 0.0
      %605 = vmatpush1.msra.mxu0 0.0
      %606 = vmatprep.subr.mxu0 0.0
      %607 = vmatpush1.msra.mxu0 0.0
      %608 = vmatprep.subr.mxu0 0.0
      %609 = vmatpush1.msra.mxu0 0.0
      %610 = vmatprep.subr.mxu0 0.0
      %611 = vmatpush1.msra.mxu0 0.0
      %612 = vmatprep.subr.mxu0 0.0
      %613 = vmatpush1.msra.mxu0 0.0
      %614 = vmatprep.mubr.f32.mxu0 0.0
      %615 = vmatmul.mubr.f32.gmra.mrb[0].mxu0 %v527
      %v616 = vpop.f32.mrb[0].mxu0
      %v617 = vadd.f32 %v524, %v616
      %v618 = vpop.f32.mrb[0].mxu0
      %619 = vmatprep.mubr.f32.mxu0 0.0
      %620 = vmatmul.mubr.f32.gmra.mrb[0].mxu0 %v530
      %v621 = vpop.f32.mrb[0].mxu0
      %v622 = vadd.f32 %v524, %v621
      %v623 = vpop.f32.mrb[0].mxu0
      %624 = vmatprep.mubr.f32.mxu0 0.0
      %625 = vmatmul.mubr.f32.gmra.mrb[0].mxu0 %v533
      %v626 = vpop.f32.mrb[0].mxu0
      %v627 = vadd.f32 %v524, %v626
      %v628 = vpop.f32.mrb[0].mxu0
      %629 = vmatprep.mubr.f32.mxu0 0.0
      %630 = vmatmul.mubr.f32.gmra.mrb[0].mxu0 %v536
      %v631 = vpop.f32.mrb[0].mxu0
      %v632 = vadd.f32 %v524, %v631
      %v633 = vpop.f32.mrb[0].mxu0
      %634 = vmatprep.mubr.f32.mxu0 0.0
      %635 = vmatmul.mubr.f32.gmra.mrb[0].mxu0 %v539
      %v636 = vpop.f32.mrb[0].mxu0
      %v637 = vadd.f32 %v524, %v636
      %v638 = vpop.f32.mrb[0].mxu0
      %639 = vmatprep.mubr.f32.mxu0 0.0
      %640 = vmatmul.mubr.f32.gmra.mrb[0].mxu0 %v542
      %v641 = vpop.f32.mrb[0].mxu0
      %v642 = vadd.f32 %v524, %v641
      %v643 = vpop.f32.mrb[0].mxu0
      %644 = vmatprep.mubr.f32.mxu0 0.0
      %645 = vmatmul.mubr.f32.gmra.mrb[0].mxu0 %v545
      %v646 = vpop.f32.mrb[0].mxu0
      %v647 = vadd.f32 %v524, %v646
      %v648 = vpop.f32.mrb[0].mxu0
      %649 = vmatprep.mubr.f32.mxu0 0.0
      %650 = vmatmul.mubr.f32.gmra.mrb[0].mxu0 %v548
      %v651 = vpop.f32.mrb[0].mxu0
      %v652 = vadd.f32 %v524, %v651
      %v653 = vpop.f32.mrb[0].mxu0
      %654 = vdwg.mxu0
      %v655 = vxor.u32 %v617, 2147483648
      %v656 = vxor.u32 %v622, 2147483648
      %v657 = vxor.u32 %v627, 2147483648
      %v658 = vxor.u32 %v632, 2147483648
      %v659 = vxor.u32 %v637, 2147483648
      %v660 = vxor.u32 %v642, 2147483648
      %v661 = vxor.u32 %v647, 2147483648
      %v662 = vxor.u32 %v652, 2147483648
      %v663 = vmul.f32 %v655, 1.442695
      %v664 = vpow.pop %v663
      %v665 = vmul.f32 %v656, 1.442695
      %v666 = vpow.pop %v665
      %v667 = vmul.f32 %v657, 1.442695
      %v668 = vpow.pop %v667
      %v669 = vmul.f32 %v658, 1.442695
      %v670 = vpow.pop %v669
      %v671 = vmul.f32 %v659, 1.442695
      %v672 = vpow.pop %v671
      %v673 = vmul.f32 %v660, 1.442695
      %v674 = vpow.pop %v673
      %v675 = vmul.f32 %v661, 1.442695
      %v676 = vpow.pop %v675
      %v677 = vmul.f32 %v662, 1.442695
      %v678 = vpow.pop %v677
      %v679 = vadd.f32 %v664, 1.0
      %v680 = vadd.f32 %v666, 1.0
      %v681 = vadd.f32 %v668, 1.0
      %v682 = vadd.f32 %v670, 1.0
      %v683 = vadd.f32 %v672, 1.0
      %v684 = vadd.f32 %v674, 1.0
      %v685 = vadd.f32 %v676, 1.0
      %v686 = vadd.f32 %v678, 1.0
      %v687 = vrcp.pop %v679
      %v688 = vmul.f32 1.0, %v687
      %v689 = vrcp.pop %v680
      %v690 = vmul.f32 1.0, %v689
      %v691 = vrcp.pop %v681
      %v692 = vmul.f32 1.0, %v691
      %v693 = vrcp.pop %v682
      %v694 = vmul.f32 1.0, %v693
      %v695 = vrcp.pop %v683
      %v696 = vmul.f32 1.0, %v695
      %v697 = vrcp.pop %v684
      %v698 = vmul.f32 1.0, %v697
      %v699 = vrcp.pop %v685
      %v700 = vmul.f32 1.0, %v699
      %v701 = vrcp.pop %v686
      %v702 = vmul.f32 1.0, %v701
      %v703 = vmul.f32 %v617, %v688
      %v704 = vmul.f32 %v622, %v690
      %v705 = vmul.f32 %v627, %v692
      %v706 = vmul.f32 %v632, %v694
      %v707 = vmul.f32 %v637, %v696
      %v708 = vmul.f32 %v642, %v698
      %v709 = vmul.f32 %v647, %v700
      %v710 = vmul.f32 %v652, %v702
      %v711 = vld [vmem:[%s4] sm:$0xff]
      %v712 = vld [vmem:[%s4 + $0x8] sm:$0xff]
      %v713 = vld [vmem:[%s4 + $0x10] sm:$0xff]
      %v714 = vld [vmem:[%s4 + $0x18] sm:$0xff]
      %v715 = vld [vmem:[%s4 + $0x20] sm:$0xff]
      %v716 = vld [vmem:[%s4 + $0x28] sm:$0xff]
      %v717 = vld [vmem:[%s4 + $0x30] sm:$0xff]
      %v718 = vld [vmem:[%s4 + $0x38] sm:$0xff]
      %v719 = vld [vmem:[%s5] sm:$0x1]
      %v721 = vlaneseq
      %v722 = vshrl.u32 %v721, 7
      %v723 = vsub.s32 0, %v722
      %v724 = vrot.slane %v719, %v723
      %v727 = vsel %vm325, %v703, 0
      %v730 = vsel %vm325, %v704, 0
      %v733 = vsel %vm325, %v705, 0
      %v736 = vsel %vm325, %v706, 0
      %v739 = vsel %vm325, %v707, 0
      %v742 = vsel %vm325, %v708, 0
      %v745 = vsel %vm325, %v709, 0
      %v748 = vsel %vm325, %v710, 0
      %750 = vmatprep.subr.mxu0 0.0
      %751 = vmatpush1.msra.mxu0 %v711
      %752 = vmatprep.subr.mxu0 0.0
      %753 = vmatpush1.msra.mxu0 %v712
      %754 = vmatprep.subr.mxu0 0.0
      %755 = vmatpush1.msra.mxu0 %v713
      %756 = vmatprep.subr.mxu0 0.0
      %757 = vmatpush1.msra.mxu0 %v714
      %758 = vmatprep.subr.mxu0 0.0
      %759 = vmatpush1.msra.mxu0 %v715
      %760 = vmatprep.subr.mxu0 0.0
      %761 = vmatpush1.msra.mxu0 %v716
      %762 = vmatprep.subr.mxu0 0.0
      %763 = vmatpush1.msra.mxu0 %v717
      %764 = vmatprep.subr.mxu0 0.0
      %765 = vmatpush1.msra.mxu0 %v718
      %766 = vmatprep.subr.mxu0 0.0
      %767 = vmatpush1.msra.mxu0 0.0
      %768 = vmatprep.subr.mxu0 0.0
      %769 = vmatpush1.msra.mxu0 0.0
      %770 = vmatprep.subr.mxu0 0.0
      %771 = vmatpush1.msra.mxu0 0.0
      %772 = vmatprep.subr.mxu0 0.0
      %773 = vmatpush1.msra.mxu0 0.0
      %774 = vmatprep.subr.mxu0 0.0
      %775 = vmatpush1.msra.mxu0 0.0
      %776 = vmatprep.subr.mxu0 0.0
      %777 = vmatpush1.msra.mxu0 0.0
      %778 = vmatprep.subr.mxu0 0.0
      %779 = vmatpush1.msra.mxu0 0.0
      %780 = vmatprep.subr.mxu0 0.0
      %781 = vmatpush1.msra.mxu0 0.0
      %782 = vmatprep.subr.mxu0 0.0
      %783 = vmatpush1.msra.mxu0 0.0
      %784 = vmatprep.subr.mxu0 0.0
      %785 = vmatpush1.msra.mxu0 0.0
      %786 = vmatprep.subr.mxu0 0.0
      %787 = vmatpush1.msra.mxu0 0.0
      %788 = vmatprep.subr.mxu0 0.0
      %789 = vmatpush1.msra.mxu0 0.0
      %790 = vmatprep.subr.mxu0 0.0
      %791 = vmatpush1.msra.mxu0 0.0
      %792 = vmatprep.subr.mxu0 0.0
      %793 = vmatpush1.msra.mxu0 0.0
      %794 = vmatprep.subr.mxu0 0.0
      %795 = vmatpush1.msra.mxu0 0.0
      %796 = vmatprep.subr.mxu0 0.0
      %797 = vmatpush1.msra.mxu0 0.0
      %798 = vmatprep.subr.mxu0 0.0
      %799 = vmatpush1.msra.mxu0 0.0
      %800 = vmatprep.subr.mxu0 0.0
      %801 = vmatpush1.msra.mxu0 0.0
      %802 = vmatprep.subr.mxu0 0.0
      %803 = vmatpush1.msra.mxu0 0.0
      %804 = vmatprep.subr.mxu0 0.0
      %805 = vmatpush1.msra.mxu0 0.0
      %806 = vmatprep.subr.mxu0 0.0
      %807 = vmatpush1.msra.mxu0 0.0
      %808 = vmatprep.subr.mxu0 0.0
      %809 = vmatpush1.msra.mxu0 0.0
      %810 = vmatprep.subr.mxu0 0.0
      %811 = vmatpush1.msra.mxu0 0.0
      %812 = vmatprep.subr.mxu0 0.0
      %813 = vmatpush1.msra.mxu0 0.0
      %814 = vmatprep.mubr.f32.mxu0 0.0
      %815 = vmatmul.mubr.f32.gmra.mrb[0].mxu0 %v727
      %v816 = vpop.f32.mrb[0].mxu0
      %v817 = vadd.f32 %v724, %v816
      %v818 = vpop.f32.mrb[0].mxu0
      %819 = vmatprep.mubr.f32.mxu0 0.0
      %820 = vmatmul.mubr.f32.gmra.mrb[0].mxu0 %v730
      %v821 = vpop.f32.mrb[0].mxu0
      %v822 = vadd.f32 %v724, %v821
      %v823 = vpop.f32.mrb[0].mxu0
      %824 = vmatprep.mubr.f32.mxu0 0.0
      %825 = vmatmul.mubr.f32.gmra.mrb[0].mxu0 %v733
      %v826 = vpop.f32.mrb[0].mxu0
      %v827 = vadd.f32 %v724, %v826
      %v828 = vpop.f32.mrb[0].mxu0
      %829 = vmatprep.mubr.f32.mxu0 0.0
      %830 = vmatmul.mubr.f32.gmra.mrb[0].mxu0 %v736
      %v831 = vpop.f32.mrb[0].mxu0
      %v832 = vadd.f32 %v724, %v831
      %v833 = vpop.f32.mrb[0].mxu0
      %834 = vmatprep.mubr.f32.mxu0 0.0
      %835 = vmatmul.mubr.f32.gmra.mrb[0].mxu0 %v739
      %v836 = vpop.f32.mrb[0].mxu0
      %v837 = vadd.f32 %v724, %v836
      %v838 = vpop.f32.mrb[0].mxu0
      %839 = vmatprep.mubr.f32.mxu0 0.0
      %840 = vmatmul.mubr.f32.gmra.mrb[0].mxu0 %v742
      %v841 = vpop.f32.mrb[0].mxu0
      %v842 = vadd.f32 %v724, %v841
      %v843 = vpop.f32.mrb[0].mxu0
      %844 = vmatprep.mubr.f32.mxu0 0.0
      %845 = vmatmul.mubr.f32.gmra.mrb[0].mxu0 %v745
      %v846 = vpop.f32.mrb[0].mxu0
      %v847 = vadd.f32 %v724, %v846
      %v848 = vpop.f32.mrb[0].mxu0
      %849 = vmatprep.mubr.f32.mxu0 0.0
      %850 = vmatmul.mubr.f32.gmra.mrb[0].mxu0 %v748
      %v851 = vpop.f32.mrb[0].mxu0
      %v852 = vadd.f32 %v724, %v851
      %v853 = vpop.f32.mrb[0].mxu0
      %854 = vdwg.mxu0
      %v855 = vld [vmem:[%s6] sm:$0xff]
      %v856 = vld [vmem:[%s6 + $0x8] sm:$0xff]
      %v857 = vld [vmem:[%s6 + $0x10] sm:$0xff]
      %v858 = vld [vmem:[%s6 + $0x18] sm:$0xff]
      %v859 = vld [vmem:[%s6 + $0x20] sm:$0xff]
      %v860 = vld [vmem:[%s6 + $0x28] sm:$0xff]
      %v861 = vld [vmem:[%s6 + $0x30] sm:$0xff]
      %v862 = vld [vmem:[%s6 + $0x38] sm:$0xff]
      %863 = vmatprep.subr.mxu0 0.0
      %864 = vmatpush1.msra.mxu0 %v855
      %865 = vmatprep.subr.mxu0 0.0
      %866 = vmatpush1.msra.mxu0 %v856
      %867 = vmatprep.subr.mxu0 0.0
      %868 = vmatpush1.msra.mxu0 %v857
      %869 = vmatprep.subr.mxu0 0.0
      %870 = vmatpush1.msra.mxu0 %v858
      %871 = vmatprep.subr.mxu0 0.0
      %872 = vmatpush1.msra.mxu0 %v859
      %873 = vmatprep.subr.mxu0 0.0
      %874 = vmatpush1.msra.mxu0 %v860
      %875 = vmatprep.subr.mxu0 0.0
      %876 = vmatpush1.msra.mxu0 %v861
      %877 = vmatprep.subr.mxu0 0.0
      %878 = vmatpush1.msra.mxu0 %v862
      %879 = vmatprep.subr.mxu0 0.0
      %880 = vmatpush1.msra.mxu0 0.0
      %881 = vmatprep.subr.mxu0 0.0
      %882 = vmatpush1.msra.mxu0 0.0
      %883 = vmatprep.subr.mxu0 0.0
      %884 = vmatpush1.msra.mxu0 0.0
      %885 = vmatprep.subr.mxu0 0.0
      %886 = vmatpush1.msra.mxu0 0.0
      %887 = vmatprep.subr.mxu0 0.0
      %888 = vmatpush1.msra.mxu0 0.0
      %889 = vmatprep.subr.mxu0 0.0
      %890 = vmatpush1.msra.mxu0 0.0
      %891 = vmatprep.subr.mxu0 0.0
      %892 = vmatpush1.msra.mxu0 0.0
      %893 = vmatprep.subr.mxu0 0.0
      %894 = vmatpush1.msra.mxu0 0.0
      %895 = vmatprep.subr.mxu0 0.0
      %896 = vmatpush1.msra.mxu0 0.0
      %897 = vmatprep.subr.mxu0 0.0
      %898 = vmatpush1.msra.mxu0 0.0
      %899 = vmatprep.subr.mxu0 0.0
      %900 = vmatpush1.msra.mxu0 0.0
      %901 = vmatprep.subr.mxu0 0.0
      %902 = vmatpush1.msra.mxu0 0.0
      %903 = vmatprep.subr.mxu0 0.0
      %904 = vmatpush1.msra.mxu0 0.0
      %905 = vmatprep.subr.mxu0 0.0
      %906 = vmatpush1.msra.mxu0 0.0
      %907 = vmatprep.subr.mxu0 0.0
      %908 = vmatpush1.msra.mxu0 0.0
      %909 = vmatprep.subr.mxu0 0.0
      %910 = vmatpush1.msra.mxu0 0.0
      %911 = vmatprep.subr.mxu0 0.0
      %912 = vmatpush1.msra.mxu0 0.0
      %913 = vmatprep.subr.mxu0 0.0
      %914 = vmatpush1.msra.mxu0 0.0
      %915 = vmatprep.subr.mxu0 0.0
      %916 = vmatpush1.msra.mxu0 0.0
      %917 = vmatprep.subr.mxu0 0.0
      %918 = vmatpush1.msra.mxu0 0.0
      %919 = vmatprep.subr.mxu0 0.0
      %920 = vmatpush1.msra.mxu0 0.0
      %921 = vmatprep.subr.mxu0 0.0
      %922 = vmatpush1.msra.mxu0 0.0
      %923 = vmatprep.subr.mxu0 0.0
      %924 = vmatpush1.msra.mxu0 0.0
      %925 = vmatprep.subr.mxu0 0.0
      %926 = vmatpush1.msra.mxu0 0.0
      %927 = vmatprep.mubr.f32.mxu0 0.0
      %928 = vmatmul.mubr.f32.gmra.mrb[0].mxu0 %v327
      %v929 = vpop.f32.mrb[0].mxu0
      %v930 = vadd.f32 0.0, %v929
      %v931 = vpop.f32.mrb[0].mxu0
      %932 = vmatprep.mubr.f32.mxu0 0.0
      %933 = vmatmul.mubr.f32.gmra.mrb[0].mxu0 %v330
      %v934 = vpop.f32.mrb[0].mxu0
      %v935 = vadd.f32 0.0, %v934
      %v936 = vpop.f32.mrb[0].mxu0
      %937 = vmatprep.mubr.f32.mxu0 0.0
      %938 = vmatmul.mubr.f32.gmra.mrb[0].mxu0 %v333
      %v939 = vpop.f32.mrb[0].mxu0
      %v940 = vadd.f32 0.0, %v939
      %v941 = vpop.f32.mrb[0].mxu0
      %942 = vmatprep.mubr.f32.mxu0 0.0
      %943 = vmatmul.mubr.f32.gmra.mrb[0].mxu0 %v336
      %v944 = vpop.f32.mrb[0].mxu0
      %v945 = vadd.f32 0.0, %v944
      %v946 = vpop.f32.mrb[0].mxu0
      %947 = vmatprep.mubr.f32.mxu0 0.0
      %948 = vmatmul.mubr.f32.gmra.mrb[0].mxu0 %v339
      %v949 = vpop.f32.mrb[0].mxu0
      %v950 = vadd.f32 0.0, %v949
      %v951 = vpop.f32.mrb[0].mxu0
      %952 = vmatprep.mubr.f32.mxu0 0.0
      %953 = vmatmul.mubr.f32.gmra.mrb[0].mxu0 %v342
      %v954 = vpop.f32.mrb[0].mxu0
      %v955 = vadd.f32 0.0, %v954
      %v956 = vpop.f32.mrb[0].mxu0
      %957 = vmatprep.mubr.f32.mxu0 0.0
      %958 = vmatmul.mubr.f32.gmra.mrb[0].mxu0 %v345
      %v959 = vpop.f32.mrb[0].mxu0
      %v960 = vadd.f32 0.0, %v959
      %v961 = vpop.f32.mrb[0].mxu0
      %962 = vmatprep.mubr.f32.mxu0 0.0
      %963 = vmatmul.mubr.f32.gmra.mrb[0].mxu0 %v348
      %v964 = vpop.f32.mrb[0].mxu0
      %v965 = vadd.f32 0.0, %v964
      %v966 = vpop.f32.mrb[0].mxu0
      %967 = vdwg.mxu0
      %v968 = vmul.f32 %v817, %v930
      %v969 = vmul.f32 %v822, %v935
      %v970 = vmul.f32 %v827, %v940
      %v971 = vmul.f32 %v832, %v945
      %v972 = vmul.f32 %v837, %v950
      %v973 = vmul.f32 %v842, %v955
      %v974 = vmul.f32 %v847, %v960
      %v975 = vmul.f32 %v852, %v965
      %v976 = vld [vmem:[%s7] sm:$0xff]
      %v977 = vld [vmem:[%s7 + $0x8] sm:$0xff]
      %v978 = vld [vmem:[%s7 + $0x10] sm:$0xff]
      %v979 = vld [vmem:[%s7 + $0x18] sm:$0xff]
      %vm980 = vcmask 261120
      %v982 = vsel %vm980, %v968, 0
      %v985 = vsel %vm980, %v969, 0
      %v988 = vsel %vm980, %v970, 0
      %v991 = vsel %vm980, %v971, 0
      %v994 = vsel %vm980, %v972, 0
      %v997 = vsel %vm980, %v973, 0
      %v1000 = vsel %vm980, %v974, 0
      %v1003 = vsel %vm980, %v975, 0
      %1005 = vmatprep.subr.mxu0 0.0
      %1006 = vmatpush1.msra.mxu0 %v976
      %1007 = vmatprep.subr.mxu0 0.0
      %1008 = vmatpush1.msra.mxu0 %v977
      %1009 = vmatprep.subr.mxu0 0.0
      %1010 = vmatpush1.msra.mxu0 %v978
      %1011 = vmatprep.subr.mxu0 0.0
      %1012 = vmatpush1.msra.mxu0 %v979
      %1013 = vmatprep.subr.mxu0 0.0
      %1014 = vmatpush1.msra.mxu0 0.0
      %1015 = vmatprep.subr.mxu0 0.0
      %1016 = vmatpush1.msra.mxu0 0.0
      %1017 = vmatprep.subr.mxu0 0.0
      %1018 = vmatpush1.msra.mxu0 0.0
      %1019 = vmatprep.subr.mxu0 0.0
      %1020 = vmatpush1.msra.mxu0 0.0
      %1021 = vmatprep.subr.mxu0 0.0
      %1022 = vmatpush1.msra.mxu0 0.0
      %1023 = vmatprep.subr.mxu0 0.0
      %1024 = vmatpush1.msra.mxu0 0.0
      %1025 = vmatprep.subr.mxu0 0.0
      %1026 = vmatpush1.msra.mxu0 0.0
      %1027 = vmatprep.subr.mxu0 0.0
      %1028 = vmatpush1.msra.mxu0 0.0
      %1029 = vmatprep.subr.mxu0 0.0
      %1030 = vmatpush1.msra.mxu0 0.0
      %1031 = vmatprep.subr.mxu0 0.0
      %1032 = vmatpush1.msra.mxu0 0.0
      %1033 = vmatprep.subr.mxu0 0.0
      %1034 = vmatpush1.msra.mxu0 0.0
      %1035 = vmatprep.subr.mxu0 0.0
      %1036 = vmatpush1.msra.mxu0 0.0
      %1037 = vmatprep.subr.mxu0 0.0
      %1038 = vmatpush1.msra.mxu0 0.0
      %1039 = vmatprep.subr.mxu0 0.0
      %1040 = vmatpush1.msra.mxu0 0.0
      %1041 = vmatprep.subr.mxu0 0.0
      %1042 = vmatpush1.msra.mxu0 0.0
      %1043 = vmatprep.subr.mxu0 0.0
      %1044 = vmatpush1.msra.mxu0 0.0
      %1045 = vmatprep.subr.mxu0 0.0
      %1046 = vmatpush1.msra.mxu0 0.0
      %1047 = vmatprep.subr.mxu0 0.0
      %1048 = vmatpush1.msra.mxu0 0.0
      %1049 = vmatprep.subr.mxu0 0.0
      %1050 = vmatpush1.msra.mxu0 0.0
      %1051 = vmatprep.subr.mxu0 0.0
      %1052 = vmatpush1.msra.mxu0 0.0
      %1053 = vmatprep.subr.mxu0 0.0
      %1054 = vmatpush1.msra.mxu0 0.0
      %1055 = vmatprep.subr.mxu0 0.0
      %1056 = vmatpush1.msra.mxu0 0.0
      %1057 = vmatprep.subr.mxu0 0.0
      %1058 = vmatpush1.msra.mxu0 0.0
      %1059 = vmatprep.subr.mxu0 0.0
      %1060 = vmatpush1.msra.mxu0 0.0
      %1061 = vmatprep.subr.mxu0 0.0
      %1062 = vmatpush1.msra.mxu0 0.0
      %1063 = vmatprep.subr.mxu0 0.0
      %1064 = vmatpush1.msra.mxu0 0.0
      %1065 = vmatprep.subr.mxu0 0.0
      %1066 = vmatpush1.msra.mxu0 0.0
      %1067 = vmatprep.subr.mxu0 0.0
      %1068 = vmatpush1.msra.mxu0 0.0
      %1069 = vmatprep.mubr.f32.mxu0 0.0
      %1070 = vmatmul.mubr.f32.gmra.mrb[0].mxu0 %v982
      %v1071 = vpop.f32.mrb[0].mxu0
      %v1072 = vadd.f32 0.0, %v1071
      %v1073 = vpop.f32.mrb[0].mxu0
      %1074 = vmatprep.mubr.f32.mxu0 0.0
      %1075 = vmatmul.mubr.f32.gmra.mrb[0].mxu0 %v985
      %v1076 = vpop.f32.mrb[0].mxu0
      %v1077 = vadd.f32 0.0, %v1076
      %v1078 = vpop.f32.mrb[0].mxu0
      %1079 = vmatprep.mubr.f32.mxu0 0.0
      %1080 = vmatmul.mubr.f32.gmra.mrb[0].mxu0 %v988
      %v1081 = vpop.f32.mrb[0].mxu0
      %v1082 = vadd.f32 0.0, %v1081
      %v1083 = vpop.f32.mrb[0].mxu0
      %1084 = vmatprep.mubr.f32.mxu0 0.0
      %1085 = vmatmul.mubr.f32.gmra.mrb[0].mxu0 %v991
      %v1086 = vpop.f32.mrb[0].mxu0
      %v1087 = vadd.f32 0.0, %v1086
      %v1088 = vpop.f32.mrb[0].mxu0
      %1089 = vmatprep.mubr.f32.mxu0 0.0
      %1090 = vmatmul.mubr.f32.gmra.mrb[0].mxu0 %v994
      %v1091 = vpop.f32.mrb[0].mxu0
      %v1092 = vadd.f32 0.0, %v1091
      %v1093 = vpop.f32.mrb[0].mxu0
      %1094 = vmatprep.mubr.f32.mxu0 0.0
      %1095 = vmatmul.mubr.f32.gmra.mrb[0].mxu0 %v997
      %v1096 = vpop.f32.mrb[0].mxu0
      %v1097 = vadd.f32 0.0, %v1096
      %v1098 = vpop.f32.mrb[0].mxu0
      %1099 = vmatprep.mubr.f32.mxu0 0.0
      %1100 = vmatmul.mubr.f32.gmra.mrb[0].mxu0 %v1000
      %v1101 = vpop.f32.mrb[0].mxu0
      %v1102 = vadd.f32 0.0, %v1101
      %v1103 = vpop.f32.mrb[0].mxu0
      %1104 = vmatprep.mubr.f32.mxu0 0.0
      %1105 = vmatmul.mubr.f32.gmra.mrb[0].mxu0 %v1003
      %v1106 = vpop.f32.mrb[0].mxu0
      %v1107 = vadd.f32 0.0, %v1106
      %v1108 = vpop.f32.mrb[0].mxu0
      %1109 = vdwg.mxu0
      %vm1110 = vcmask 64512
      %1111 = vst.msk [vmem:[%s307] sm:$0xff] %vm1110, %v1072
      %1112 = vst.msk [vmem:[%s307 + $0x8] sm:$0xff] %vm1110, %v1077
      %1113 = vst.msk [vmem:[%s307 + $0x10] sm:$0xff] %vm1110, %v1082
      %1114 = vst.msk [vmem:[%s307 + $0x18] sm:$0xff] %vm1110, %v1087
      %1115 = vst.msk [vmem:[%s307 + $0x20] sm:$0xff] %vm1110, %v1092
      %1116 = vst.msk [vmem:[%s307 + $0x28] sm:$0xff] %vm1110, %v1097
      %1117 = vst.msk [vmem:[%s307 + $0x30] sm:$0xff] %vm1110, %v1102
      %1118 = vst.msk [vmem:[%s307 + $0x38] sm:$0xff] %vm1110, %v1107
      %s1119 = smul.u32 8, %s19
      %p1120 = scmp.lt.s32.totalorder %s1119, 31
      %s1121 = scalar_select %p1120, %s1119, 31
      %s1122 = smul.addr %s1121, 8
      %s1123 = scalar_lea.vmem %s8, %s1122
      // Predicated region
      $region53: #{tpu_custom_call.1} parent=51 // pred_check
        %p1124 = pneg %p210
      $region54: #{tpu_custom_call.1} parent=51 // pred_check_branch
        %1126 = sbr.rel (%p1124) target = $region56
      $region55: #{tpu_custom_call.1} parent=51 // pred_region
        %s1127 = smul.u32 8, %s19
      $region56: #{tpu_custom_call.1} parent=51 // pred_fallthru
        _
    $region52: #{tpu_custom_call.1} parent=5 // pred_fallthru
      _
    %p1128 = scmp.le.s32.totalorder 2, %s14
    // Predicated region
    $region57: #{tpu_custom_call.1} parent=5 // pred_check
      %p1129 = pneg %p1128
    $region58: #{tpu_custom_call.1} parent=5 // pred_check_branch
      %1131 = sbr.rel (%p1129) target = $region60
    $region59: #{tpu_custom_call.1} parent=5 // pred_region
      %s1132 = ssub.s32 %s14, 2
      // Predicated region
      $region61: #{tpu_custom_call.1} parent=59 // pred_check
        %p1133 = pneg %p216
      $region62: #{tpu_custom_call.1} parent=59 // pred_check_branch
        %1135 = sbr.rel (%p1133) target = $region64
      $region63: #{tpu_custom_call.1} parent=59 // pred_region
        %s1136 = smul.u32 8, %s20
        %p1137 = scmp.lt.s32.totalorder %s1136, 31
        %s1138 = scalar_select %p1137, %s1136, 31
        %s1139 = smul.addr %s1138, 8
        %s1140 = scalar_lea.vmem %s8, %s1139
      $region64: #{tpu_custom_call.1} parent=59 // pred_fallthru
        _
    $region60: #{tpu_custom_call.1} parent=5 // pred_fallthru
      _
  $region6: #{tpu_custom_call.1} parent=0 // loop_footer
    %s18 = sadd.s32 1, %s14
  $region7: #{tpu_custom_call.1} parent=0 // loop_footer_branch
    %13 = sbr.rel target = $region3
  $region8: #{tpu_custom_call.1} parent=0 // loop_exit
    _

</llo_original>
